<compile_context>
chip_gen: v7x
topology: tpu7x:2x2x1
jax: 0.10.0
libtpu: 0.0.40
codegen_flags: <defaults>
</compile_context>

<pallas_src>
import jax
import jax.numpy as jnp
from jax.experimental import pallas as pl
from jax.experimental.pallas import tpu as pltpu


def _round_up(x, m):
    return (x + m - 1) // m * m


def _pad2(a, rows, cols):
    """Zero-pad a 2-D array to (rows, cols); returns `a` unchanged if it already fits."""
    r, c = a.shape
    if (r, c) == (rows, cols):
        return a
    return jnp.zeros((rows, cols), a.dtype).at[:r, :c].set(a)


def _ffn_kernel(x_ref, w1_ref, b1_ref, w2_ref, b2_ref, o_ref, acc_ref):
    """One (row-tile i, hidden-tile j) step of the fused FFN."""
    j = pl.program_id(1)

    @pl.when(j == 0)
    def _():
        acc_ref[...] = jnp.zeros_like(acc_ref)

    # h_j = relu(x_i @ W1[:, j-tile] + b1[j-tile])            -> (tm, tk) f32
    h = jnp.dot(x_ref[...], w1_ref[...], preferred_element_type=jnp.float32)
    h = jnp.maximum(h + b1_ref[...], 0.0)

    # acc += h_j @ W2[j-tile, :]                               -> (tm, N_pad) f32
    acc_ref[...] += jnp.dot(h.astype(w2_ref.dtype), w2_ref[...],
                            preferred_element_type=jnp.float32)

    @pl.when(j == pl.num_programs(1) - 1)
    def _():
        o_ref[...] = (acc_ref[...] + b2_ref[...]).astype(o_ref.dtype)


def feed_forward(x, w1, b1, w2, b2, *, tm=256, tk=512):
    """Fused relu(x @ w1 + b1) @ w2 + b2.

    x : (..., in_dim)                      (leading dims are flattened, like nn.Linear)
    w1: (in_dim, in_dim),  b1: (in_dim,)   (layer1, pre-transposed to x @ W layout)
    w2: (in_dim, out_dim), b2: (out_dim,)  (layer2)
    tm: batch row tile (multiple of 8);  tk: hidden-dim tile (multiple of 128).
    """
    in_dim = x.shape[-1]
    lead = x.shape[:-1]
    out_dim = w2.shape[1]
    assert w1.shape == (in_dim, in_dim)
    assert w2.shape[0] == in_dim

    x2d = x.reshape(-1, in_dim)
    M = x2d.shape[0]

    # --- lane-dense feature padding (multiples of 128) ---------------------------
    K_pad = _round_up(in_dim, 128)
    tk = max(128, _round_up(min(tk, K_pad), 128))
    K_pad = _round_up(K_pad, tk)                  # tk divides the padded hidden dim
    N_pad = _round_up(out_dim, 128)

    # --- row padding so the row tile divides the batch ---------------------------
    M_pad = _round_up(max(M, 1), 8)
    tm = max(8, _round_up(min(tm, M_pad), 8))
    M_pad = _round_up(M_pad, tm)

    dt = x.dtype
    xp = _pad2(x2d, M_pad, K_pad)
    w1p = _pad2(w1, K_pad, K_pad)
    b1p = _pad2(jnp.reshape(b1, (1, in_dim)), 1, K_pad)
    w2p = _pad2(w2, K_pad, N_pad)
    b2p = _pad2(jnp.reshape(b2, (1, out_dim)), 1, N_pad)

    grid = (M_pad // tm, K_pad // tk)

    flops = 2 * M * in_dim * (in_dim + out_dim)
    bytes_accessed = (
        x2d.size * x.dtype.itemsize
        + w1.size * w1.dtype.itemsize + b1.size * b1.dtype.itemsize
        + w2.size * w2.dtype.itemsize + b2.size * b2.dtype.itemsize
        + M * out_dim * x.dtype.itemsize
    )

    # Constant-index blocks (x row tile across j, b2, output) are not re-DMA'd per
    # j step; they are merely double-buffered, and tm/tk defaults keep the working
    # set well under v7x's 64 MiB VMEM.
    out_padded = pl.pallas_call(
        _ffn_kernel,
        out_shape=jax.ShapeDtypeStruct((M_pad, N_pad), dt),
        grid_spec=pltpu.PrefetchScalarGridSpec(
            num_scalar_prefetch=0,
            grid=grid,
            in_specs=[
                pl.BlockSpec((tm, K_pad), lambda i, j: (i, 0)),   # x row tile (held across j)
                pl.BlockSpec((K_pad, tk), lambda i, j: (0, j)),   # W1 column tile
                pl.BlockSpec((1, tk), lambda i, j: (0, j)),       # b1 tile
                pl.BlockSpec((tk, N_pad), lambda i, j: (j, 0)),   # W2 row tile
                pl.BlockSpec((1, N_pad), lambda i, j: (0, 0)),    # b2 (full)
            ],
            out_specs=pl.BlockSpec((tm, N_pad), lambda i, j: (i, 0)),
            scratch_shapes=[pltpu.VMEM((tm, N_pad), jnp.float32)],
        ),
        compiler_params=pltpu.CompilerParams(
            dimension_semantics=("parallel", "arbitrary"),
            vmem_limit_bytes=64 << 20,
        ),
        cost_estimate=pl.CostEstimate(
            flops=flops, transcendentals=0, bytes_accessed=bytes_accessed
        ),
    )(xp, w1p, b1p, w2p, b2p)

    return out_padded[:M, :out_dim].reshape(*lead, out_dim)


# ------------------------------ test helpers ----------------------------------

def _xavier_normal(key, fan_out, fan_in, dtype=jnp.float32):
    # Matches nn.init.xavier_normal_ on a (fan_out, fan_in) torch weight matrix.
    std = (2.0 / (fan_in + fan_out)) ** 0.5
    return std * jax.random.normal(key, (fan_out, fan_in), dtype=dtype)


def _make_params(key, in_dim, out_dim):
    k1, k2, kb1, kb2 = jax.random.split(key, 4)
    w1_torch = _xavier_normal(k1, in_dim, in_dim)            # (out, in) torch layout
    w2_torch = _xavier_normal(k2, out_dim, in_dim)
    b1 = 0.01 * jax.random.normal(kb1, (in_dim,), dtype=jnp.float32)
    b2 = 0.01 * jax.random.normal(kb2, (out_dim,), dtype=jnp.float32)
    # Pre-transpose to (in_features, out_features) for x @ W in-kernel.
    return w1_torch.T, b1, w2_torch.T, b2


def _reference(x, w1, b1, w2, b2):
    return jnp.maximum(x @ w1 + b1[None, :], 0.0) @ w2 + b2[None, :]


if __name__ == "__main__":
    key = jax.random.PRNGKey(0)
    k_small, k_big, kx1, kx2 = jax.random.split(key, 4)

    # Case 1: tiny shapes matching the module spec (exercises padding to 128 lanes).
    in_dim, out_dim, batch = 32, 16, 8
    x = jax.random.normal(kx1, (batch, in_dim), dtype=jnp.float32)
    w1, b1, w2, b2 = _make_params(k_small, in_dim, out_dim)
    out = jax.block_until_ready(feed_forward(x, w1, b1, w2, b2))
    ref = _reference(x, w1, b1, w2, b2)
    assert out.shape == (batch, out_dim)
    assert jnp.allclose(out, ref, atol=1e-5, rtol=1e-5)

    # Case 2: shapes exercising the hidden-dim tiling / accumulator path (>1 j tile)
    # plus a leading batch dim (flattened like nn.Linear).
    in_dim2, out_dim2 = 256, 64
    x2 = jax.random.normal(kx2, (2, 16, in_dim2), dtype=jnp.float32)
    w1b, b1b, w2b, b2b = _make_params(k_big, in_dim2, out_dim2)
    out2 = jax.block_until_ready(feed_forward(x2, w1b, b1b, w2b, b2b, tm=256, tk=128))
    ref2 = _reference(x2.reshape(-1, in_dim2), w1b, b1b, w2b, b2b).reshape(2, 16, out_dim2)
    assert out2.shape == (2, 16, out_dim2)
    assert jnp.allclose(out2, ref2, atol=1e-4, rtol=1e-5)

    print("KERNEL_OK")
</pallas_src>

<mosaic_0001>
module attributes {stable_mosaic.version = 11 : i64} {
  func.func @_ffn_kernel(%arg0: i32, %arg1: i32, %arg2: memref<8x128xf32, #tpu.memory_space<vmem>>, %arg3: memref<128x128xf32, #tpu.memory_space<vmem>>, %arg4: memref<1x128xf32, #tpu.memory_space<vmem>>, %arg5: memref<128x128xf32, #tpu.memory_space<vmem>>, %arg6: memref<1x128xf32, #tpu.memory_space<vmem>>, %arg7: memref<8x128xf32, #tpu.memory_space<vmem>>, %arg8: memref<8x128xf32, #tpu.memory_space<vmem>>) attributes {dimension_semantics = [#tpu.dimension_semantics<parallel>, #tpu.dimension_semantics<arbitrary>], iteration_bounds = array<i64: 1, 1>, scalar_prefetch = 0 : i64, scratch_operands = 1 : i64, tpu.core_type = #tpu.core_type<tc>, window_params = [{transform_indices = @transform_0, window_bounds = array<i64: 8, 128>}, {transform_indices = @transform_1, window_bounds = array<i64: 128, 128>}, {transform_indices = @transform_2, window_bounds = array<i64: 1, 128>}, {transform_indices = @transform_3, window_bounds = array<i64: 128, 128>}, {pipeline_mode = #tpu.pipeline_mode<synchronous>, transform_indices = @transform_4, window_bounds = array<i64: 1, 128>}, {transform_indices = @transform_5, window_bounds = array<i64: 8, 128>}]} {
    %c0_i32 = arith.constant 0 : i32
    %0 = arith.cmpi eq, %arg1, %c0_i32 : i32
    %1 = arith.extui %0 : i1 to i32
    %c0_i32_0 = arith.constant 0 : i32
    %2 = arith.cmpi ne, %1, %c0_i32_0 : i32
    scf.if %2 {
      %cst_16 = arith.constant 0.000000e+00 : f32
      %19 = vector.broadcast %cst_16 : f32 to vector<8x128xf32>
      %c0_17 = arith.constant 0 : index
      %c0_18 = arith.constant 0 : index
      %20 = vector.load %arg8[%c0_17, %c0_18] : memref<8x128xf32, #tpu.memory_space<vmem>>, vector<8x128xf32>
      tpu.vector_store %arg8[%c0_17, %c0_18], %19 {strides = array<i32>} : memref<8x128xf32, #tpu.memory_space<vmem>>, vector<8x128xf32>,
    } else {
    }
    %c0 = arith.constant 0 : index
    %c0_1 = arith.constant 0 : index
    %3 = vector.load %arg2[%c0, %c0_1] : memref<8x128xf32, #tpu.memory_space<vmem>>, vector<8x128xf32>
    %c0_2 = arith.constant 0 : index
    %c0_3 = arith.constant 0 : index
    %4 = vector.load %arg3[%c0_2, %c0_3] : memref<128x128xf32, #tpu.memory_space<vmem>>, vector<128x128xf32>
    %cst = arith.constant dense<0.000000e+00> : vector<8x128xf32>
    %5 = tpu.matmul %3, %4, %cst {dimension_numbers = #tpu.dot_dimension_numbers<[1], [0], [0], [1], [0, 0, 1, 1], [], []>} : vector<8x128xf32>, vector<128x128xf32>, vector<8x128xf32> -> vector<8x128xf32>
    %c0_4 = arith.constant 0 : index
    %c0_5 = arith.constant 0 : index
    %6 = vector.load %arg4[%c0_4, %c0_5] : memref<1x128xf32, #tpu.memory_space<vmem>>, vector<1x128xf32>
    %7 = vector.broadcast %6 : vector<1x128xf32> to vector<8x128xf32>
    %8 = arith.addf %5, %7 : vector<8x128xf32>
    %cst_6 = arith.constant 0.000000e+00 : f32
    %9 = vector.broadcast %cst_6 : f32 to vector<8x128xf32>
    %10 = arith.maximumf %8, %9 : vector<8x128xf32>
    %c0_7 = arith.constant 0 : index
    %c0_8 = arith.constant 0 : index
    %11 = vector.load %arg8[%c0_7, %c0_8] : memref<8x128xf32, #tpu.memory_space<vmem>>, vector<8x128xf32>
    %c0_9 = arith.constant 0 : index
    %c0_10 = arith.constant 0 : index
    %12 = vector.load %arg5[%c0_9, %c0_10] : memref<128x128xf32, #tpu.memory_space<vmem>>, vector<128x128xf32>
    %cst_11 = arith.constant dense<0.000000e+00> : vector<8x128xf32>
    %13 = tpu.matmul %10, %12, %cst_11 {dimension_numbers = #tpu.dot_dimension_numbers<[1], [0], [0], [1], [0, 0, 1, 1], [], []>} : vector<8x128xf32>, vector<128x128xf32>, vector<8x128xf32> -> vector<8x128xf32>
    %14 = arith.addf %11, %13 : vector<8x128xf32>
    %c0_12 = arith.constant 0 : index
    %c0_13 = arith.constant 0 : index
    %15 = vector.load %arg8[%c0_12, %c0_13] : memref<8x128xf32, #tpu.memory_space<vmem>>, vector<8x128xf32>
    tpu.vector_store %arg8[%c0_12, %c0_13], %14 {strides = array<i32>} : memref<8x128xf32, #tpu.memory_space<vmem>>, vector<8x128xf32>,
    %c0_i32_14 = arith.constant 0 : i32
    %16 = arith.cmpi eq, %arg1, %c0_i32_14 : i32
    %17 = arith.extui %16 : i1 to i32
    %c0_i32_15 = arith.constant 0 : i32
    %18 = arith.cmpi ne, %17, %c0_i32_15 : i32
    scf.if %18 {
      %c0_16 = arith.constant 0 : index
      %c0_17 = arith.constant 0 : index
      %19 = vector.load %arg8[%c0_16, %c0_17] : memref<8x128xf32, #tpu.memory_space<vmem>>, vector<8x128xf32>
      %c0_18 = arith.constant 0 : index
      %c0_19 = arith.constant 0 : index
      %20 = vector.load %arg6[%c0_18, %c0_19] : memref<1x128xf32, #tpu.memory_space<vmem>>, vector<1x128xf32>
      %21 = vector.broadcast %20 : vector<1x128xf32> to vector<8x128xf32>
      %22 = arith.addf %19, %21 : vector<8x128xf32>
      %c0_20 = arith.constant 0 : index
      %c0_21 = arith.constant 0 : index
      %23 = vector.load %arg7[%c0_20, %c0_21] : memref<8x128xf32, #tpu.memory_space<vmem>>, vector<8x128xf32>
      tpu.vector_store %arg7[%c0_20, %c0_21], %22 {strides = array<i32>} : memref<8x128xf32, #tpu.memory_space<vmem>>, vector<8x128xf32>,
    } else {
    }
    return
  }
  func.func @transform_0(%arg0: i32, %arg1: i32) -> (i32, i32) {
    %c0_i32 = arith.constant 0 : i32
    %c0_i32_0 = arith.constant 0 : i32
    return %arg0, %c0_i32 : i32, i32
  }
  func.func @transform_1(%arg0: i32, %arg1: i32) -> (i32, i32) {
    %c0_i32 = arith.constant 0 : i32
    %c0_i32_0 = arith.constant 0 : i32
    return %c0_i32, %arg1 : i32, i32
  }
  func.func @transform_2(%arg0: i32, %arg1: i32) -> (i32, i32) {
    %c0_i32 = arith.constant 0 : i32
    %c0_i32_0 = arith.constant 0 : i32
    return %c0_i32, %arg1 : i32, i32
  }
  func.func @transform_3(%arg0: i32, %arg1: i32) -> (i32, i32) {
    %c0_i32 = arith.constant 0 : i32
    %c0_i32_0 = arith.constant 0 : i32
    return %arg1, %c0_i32 : i32, i32
  }
  func.func @transform_4(%arg0: i32, %arg1: i32) -> (i32, i32) {
    %c0_i32 = arith.constant 0 : i32
    %c0_i32_0 = arith.constant 0 : i32
    %c0_i32_1 = arith.constant 0 : i32
    return %c0_i32, %c0_i32_0 : i32, i32
  }
  func.func @transform_5(%arg0: i32, %arg1: i32) -> (i32, i32) {
    %c0_i32 = arith.constant 0 : i32
    %c0_i32_0 = arith.constant 0 : i32
    return %arg0, %c0_i32 : i32, i32
  }
}

</mosaic_0001>

<llo_original>
// kernel: tpu_custom_call.1
$region0: #{tpu_custom_call.1}
  #allocation0 [shape = 'u32[]', space=smem, size = 0x4, offset = 0x4, fixed_abs, tag = 'smem constant byte address 0x4 - core index']
  #allocation1 [shape = 'u32[144,128]{1,0:T(1,128)}', space=vmem, size = 0x12000, scoped, tag = 'internal scratch']
  #allocation2 [shape = 'f32[8,128]{1,0:T(8,128)}', space=vmem, size = 0x1000, scoped, tag = 'scratch operand']
  %s0 = inlined_call_operand.hbm [shape: f32[8,128], index: 0, kind: input, shape index: {}]
  %s1 = inlined_call_operand.hbm [shape: f32[128,128], index: 1, kind: input, shape index: {}]
  %s2 = inlined_call_operand.hbm [shape: f32[1,128], index: 2, kind: input, shape index: {}]
  %s3 = inlined_call_operand.hbm [shape: f32[128,128], index: 3, kind: input, shape index: {}]
  %s4 = inlined_call_operand.hbm [shape: f32[1,128], index: 4, kind: input, shape index: {}]
  %s5 = inlined_call_operand.hbm [shape: f32[8,128], index: 5, kind: output, shape index: {}]
  %s6 = sld [smem:[#allocation0]]
  $region58: #{tpu_custom_call.1} parent=0
    _
  %s8 = ssub.s32 1, %s6
  %s9 = scalar_select 0, %s8, %s6
  $region1: #{tpu_custom_call.1} parent=0
    #allocation3 [shape = 'u8[4096]{0}', space=vmem, size = 0x1000, scoped, tag = 'input window, operand 0, single buffered']
    #allocation4 [shape = 's32[1]{0}', space=sflag, size = 0x4, scoped, tag = 'scoped memory for tpu_custom_call.1']
    #allocation5 [shape = 's32[1]{0}', space=sflag, size = 0x4, scoped, tag = 'scoped memory for tpu_custom_call.1']
    #allocation6 [shape = 'u8[65536]{0}', space=vmem, size = 0x10000, scoped, tag = 'input window, operand 1, single buffered']
    #allocation7 [shape = 's32[1]{0}', space=sflag, size = 0x4, scoped, tag = 'scoped memory for tpu_custom_call.1']
    #allocation8 [shape = 'u8[512]{0}', space=vmem, size = 0x400, scoped, tag = 'input window, operand 2, single buffered']
    #allocation9 [shape = 'u8[65536]{0}', space=vmem, size = 0x10000, scoped, tag = 'input window, operand 3, single buffered']
    #allocation10 [shape = 's32[1]{0}', space=sflag, size = 0x4, scoped, tag = 'scoped memory for tpu_custom_call.1']
    #allocation11 [shape = 'u8[512]{0}', space=vmem, size = 0x400, scoped, tag = 'input window, operand 4, single buffered']
    #allocation12 [shape = 'u8[4096]{0}', space=vmem, size = 0x1000, scoped, tag = 'output window, operand 0, single buffered']
    %10 = vsyncpa [#allocation4], 0
    %11 = vsyncpa [#allocation7], 0
    %12 = vsyncpa [#allocation10], 0
    %13 = vsyncpa [#allocation5], 0
    // Predicated region
    $region2: #{tpu_custom_call.1} parent=1 // pred_check
      _
    $region3: #{tpu_custom_call.1} parent=1 // pred_check_branch
      %15 = sbr.rel (0) target = $region5
    $region4: #{tpu_custom_call.1} parent=1 // pred_region
      %s17 = ssub.s32 128, 128
      %18 = vsyncadd [#allocation4], %s17
      %s20 = sshll.u32 [#allocation3], 4
      %s21 = int_to_ptr.vmem [resolvable:$true] %s20
      %23 = dma.hbm_to_vmem [thread:$0]  %s0, 128, %s21, [#allocation4]
    $region5: #{tpu_custom_call.1} parent=1 // pred_fallthru
      _
    // Predicated region
    $region6: #{tpu_custom_call.1} parent=1 // pred_check
      _
    $region7: #{tpu_custom_call.1} parent=1 // pred_check_branch
      %25 = sbr.rel (0) target = $region9
    $region8: #{tpu_custom_call.1} parent=1 // pred_region
      %s27 = ssub.s32 2048, 2048
      %28 = vsyncadd [#allocation7], %s27
      %s29 = sshll.u32 [#allocation6], 4
      %s30 = int_to_ptr.vmem [resolvable:$true] %s29
      %35 = dma.hbm_to_vmem [thread:$0]  %s1, 2048, %s30, [#allocation7], 128, 128, 8
    $region9: #{tpu_custom_call.1} parent=1 // pred_fallthru
      _
    // Predicated region
    $region10: #{tpu_custom_call.1} parent=1 // pred_check
      _
    $region11: #{tpu_custom_call.1} parent=1 // pred_check_branch
      %37 = sbr.rel (0) target = $region13
    $region12: #{tpu_custom_call.1} parent=1 // pred_region
      %s39 = ssub.s32 16, 16
      %40 = vsyncadd [#allocation7], %s39
      %s42 = sshll.u32 [#allocation8], 4
      %s43 = int_to_ptr.vmem [resolvable:$true] %s42
      %45 = dma.hbm_to_vmem [thread:$0]  %s2, 16, %s43, [#allocation7]
    $region13: #{tpu_custom_call.1} parent=1 // pred_fallthru
      _
    // Predicated region
    $region14: #{tpu_custom_call.1} parent=1 // pred_check
      _
    $region15: #{tpu_custom_call.1} parent=1 // pred_check_branch
      %47 = sbr.rel (0) target = $region17
    $region16: #{tpu_custom_call.1} parent=1 // pred_region
      %s49 = ssub.s32 2048, 2048
      %50 = vsyncadd [#allocation10], %s49
      %s51 = sshll.u32 [#allocation9], 4
      %s52 = int_to_ptr.vmem [resolvable:$true] %s51
      %57 = dma.hbm_to_vmem [thread:$0]  %s3, 2048, %s52, [#allocation10], 128, 128, 8
    $region17: #{tpu_custom_call.1} parent=1 // pred_fallthru
      _
    // Predicated region
    $region18: #{tpu_custom_call.1} parent=1 // pred_check
      _
    $region19: #{tpu_custom_call.1} parent=1 // pred_check_branch
      %59 = sbr.rel (0) target = $region21
    $region20: #{tpu_custom_call.1} parent=1 // pred_region
      %s61 = ssub.s32 16, 16
      %62 = vsyncadd [#allocation10], %s61
      %s64 = sshll.u32 [#allocation11], 4
      %s65 = int_to_ptr.vmem [resolvable:$true] %s64
      %67 = dma.hbm_to_vmem [thread:$0]  %s4, 16, %s65, [#allocation10]
    $region21: #{tpu_custom_call.1} parent=1 // pred_fallthru
      _
    // Predicated region
    $region22: #{tpu_custom_call.1} parent=1 // pred_check
      _
    $region23: #{tpu_custom_call.1} parent=1 // pred_check_branch
      %69 = sbr.rel (0) target = $region25
    $region24: #{tpu_custom_call.1} parent=1 // pred_region
      %70 = dma.done [#allocation4], 128
    $region25: #{tpu_custom_call.1} parent=1 // pred_fallthru
      _
    // Predicated region
    $region26: #{tpu_custom_call.1} parent=1 // pred_check
      _
    $region27: #{tpu_custom_call.1} parent=1 // pred_check_branch
      %72 = sbr.rel (0) target = $region29
    $region28: #{tpu_custom_call.1} parent=1 // pred_region
      %73 = dma.done [#allocation7], 2048
    $region29: #{tpu_custom_call.1} parent=1 // pred_fallthru
      _
    // Predicated region
    $region30: #{tpu_custom_call.1} parent=1 // pred_check
      _
    $region31: #{tpu_custom_call.1} parent=1 // pred_check_branch
      %75 = sbr.rel (0) target = $region33
    $region32: #{tpu_custom_call.1} parent=1 // pred_region
      %76 = dma.done [#allocation7], 16
    $region33: #{tpu_custom_call.1} parent=1 // pred_fallthru
      _
    // Predicated region
    $region34: #{tpu_custom_call.1} parent=1 // pred_check
      _
    $region35: #{tpu_custom_call.1} parent=1 // pred_check_branch
      %78 = sbr.rel (0) target = $region37
    $region36: #{tpu_custom_call.1} parent=1 // pred_region
      %79 = dma.done [#allocation10], 2048
    $region37: #{tpu_custom_call.1} parent=1 // pred_fallthru
      _
    // Predicated region
    $region38: #{tpu_custom_call.1} parent=1 // pred_check
      _
    $region39: #{tpu_custom_call.1} parent=1 // pred_check_branch
      %81 = sbr.rel (0) target = $region41
    $region40: #{tpu_custom_call.1} parent=1 // pred_region
      %82 = dma.done [#allocation10], 16
    $region41: #{tpu_custom_call.1} parent=1 // pred_fallthru
      _
    %p83 = scmp.eq.s32.totalorder 0, 0
    // Predicated region
    $region42: #{tpu_custom_call.1} parent=1 // pred_check
      %p84 = pneg %p83
    $region43: #{tpu_custom_call.1} parent=1 // pred_check_branch
      %86 = sbr.rel (%p84) target = $region45
    $region44: #{tpu_custom_call.1} parent=1 // pred_region
      %87 = vst [vmem:[#allocation2] sm:$0xff] 0.0
    $region45: #{tpu_custom_call.1} parent=1 // pred_fallthru
      _
    %v88 = vld [vmem:[#allocation3] sm:$0xff]
    %v89 = vld [vmem:[#allocation6] sm:$0xff]
    %v90 = vld [vmem:[#allocation6 + $0x8] sm:$0xff]
    %v91 = vld [vmem:[#allocation6 + $0x10] sm:$0xff]
    %v92 = vld [vmem:[#allocation6 + $0x18] sm:$0xff]
    %v93 = vld [vmem:[#allocation6 + $0x20] sm:$0xff]
    %v94 = vld [vmem:[#allocation6 + $0x28] sm:$0xff]
    %v95 = vld [vmem:[#allocation6 + $0x30] sm:$0xff]
    %v96 = vld [vmem:[#allocation6 + $0x38] sm:$0xff]
    %v97 = vld [vmem:[#allocation6 + $0x40] sm:$0xff]
    %v98 = vld [vmem:[#allocation6 + $0x48] sm:$0xff]
    %v99 = vld [vmem:[#allocation6 + $0x50] sm:$0xff]
    %v100 = vld [vmem:[#allocation6 + $0x58] sm:$0xff]
    %v101 = vld [vmem:[#allocation6 + $0x60] sm:$0xff]
    %v102 = vld [vmem:[#allocation6 + $0x68] sm:$0xff]
    %v103 = vld [vmem:[#allocation6 + $0x70] sm:$0xff]
    %v104 = vld [vmem:[#allocation6 + $0x78] sm:$0xff]
    %v105 = vld [vmem:[#allocation8] sm:$0x1]
    %v107 = vlaneseq
    %v108 = vshrl.u32 %v107, 7
    %v109 = vsub.s32 0, %v108
    %v110 = vrot.slane %v105, %v109
    %112 = vmatprep.subr.mxu0 0.0
    %113 = vmatpush1.msra.mxu0 %v89
    %114 = vmatprep.subr.mxu0 0.0
    %115 = vmatpush1.msra.mxu0 %v90
    %116 = vmatprep.subr.mxu0 0.0
    %117 = vmatpush1.msra.mxu0 %v91
    %118 = vmatprep.subr.mxu0 0.0
    %119 = vmatpush1.msra.mxu0 %v92
    %120 = vmatprep.subr.mxu0 0.0
    %121 = vmatpush1.msra.mxu0 %v93
    %122 = vmatprep.subr.mxu0 0.0
    %123 = vmatpush1.msra.mxu0 %v94
    %124 = vmatprep.subr.mxu0 0.0
    %125 = vmatpush1.msra.mxu0 %v95
    %126 = vmatprep.subr.mxu0 0.0
    %127 = vmatpush1.msra.mxu0 %v96
    %128 = vmatprep.subr.mxu0 0.0
    %129 = vmatpush1.msra.mxu0 %v97
    %130 = vmatprep.subr.mxu0 0.0
    %131 = vmatpush1.msra.mxu0 %v98
    %132 = vmatprep.subr.mxu0 0.0
    %133 = vmatpush1.msra.mxu0 %v99
    %134 = vmatprep.subr.mxu0 0.0
    %135 = vmatpush1.msra.mxu0 %v100
    %136 = vmatprep.subr.mxu0 0.0
    %137 = vmatpush1.msra.mxu0 %v101
    %138 = vmatprep.subr.mxu0 0.0
    %139 = vmatpush1.msra.mxu0 %v102
    %140 = vmatprep.subr.mxu0 0.0
    %141 = vmatpush1.msra.mxu0 %v103
    %142 = vmatprep.subr.mxu0 0.0
    %143 = vmatpush1.msra.mxu0 %v104
    %144 = vmatprep.subr.mxu0 0.0
    %145 = vmatpush1.msra.mxu0 0.0
    %146 = vmatprep.subr.mxu0 0.0
    %147 = vmatpush1.msra.mxu0 0.0
    %148 = vmatprep.subr.mxu0 0.0
    %149 = vmatpush1.msra.mxu0 0.0
    %150 = vmatprep.subr.mxu0 0.0
    %151 = vmatpush1.msra.mxu0 0.0
    %152 = vmatprep.subr.mxu0 0.0
    %153 = vmatpush1.msra.mxu0 0.0
    %154 = vmatprep.subr.mxu0 0.0
    %155 = vmatpush1.msra.mxu0 0.0
    %156 = vmatprep.subr.mxu0 0.0
    %157 = vmatpush1.msra.mxu0 0.0
    %158 = vmatprep.subr.mxu0 0.0
    %159 = vmatpush1.msra.mxu0 0.0
    %160 = vmatprep.subr.mxu0 0.0
    %161 = vmatpush1.msra.mxu0 0.0
    %162 = vmatprep.subr.mxu0 0.0
    %163 = vmatpush1.msra.mxu0 0.0
    %164 = vmatprep.subr.mxu0 0.0
    %165 = vmatpush1.msra.mxu0 0.0
    %166 = vmatprep.subr.mxu0 0.0
    %167 = vmatpush1.msra.mxu0 0.0
    %168 = vmatprep.subr.mxu0 0.0
    %169 = vmatpush1.msra.mxu0 0.0
    %170 = vmatprep.subr.mxu0 0.0
    %171 = vmatpush1.msra.mxu0 0.0
    %172 = vmatprep.subr.mxu0 0.0
    %173 = vmatpush1.msra.mxu0 0.0
    %174 = vmatprep.subr.mxu0 0.0
    %175 = vmatpush1.msra.mxu0 0.0
    %176 = vmatprep.mubr.f32.mxu0 0.0
    %177 = vmatmul.mubr.f32.gmra.mrb[0].mxu0 %v88
    %v178 = vpop.f32.mrb[0].mxu0
    %v179 = vadd.f32 %v110, %v178
    %v180 = vpop.f32.mrb[0].mxu0
    %181 = vdwg.mxu0
    %v182 = vmax.f32 %v179, 0.0
    %v183 = vld [vmem:[#allocation2] sm:$0xff]
    %v184 = vld [vmem:[#allocation9] sm:$0xff]
    %v185 = vld [vmem:[#allocation9 + $0x8] sm:$0xff]
    %v186 = vld [vmem:[#allocation9 + $0x10] sm:$0xff]
    %v187 = vld [vmem:[#allocation9 + $0x18] sm:$0xff]
    %v188 = vld [vmem:[#allocation9 + $0x20] sm:$0xff]
    %v189 = vld [vmem:[#allocation9 + $0x28] sm:$0xff]
    %v190 = vld [vmem:[#allocation9 + $0x30] sm:$0xff]
    %v191 = vld [vmem:[#allocation9 + $0x38] sm:$0xff]
    %v192 = vld [vmem:[#allocation9 + $0x40] sm:$0xff]
    %v193 = vld [vmem:[#allocation9 + $0x48] sm:$0xff]
    %v194 = vld [vmem:[#allocation9 + $0x50] sm:$0xff]
    %v195 = vld [vmem:[#allocation9 + $0x58] sm:$0xff]
    %v196 = vld [vmem:[#allocation9 + $0x60] sm:$0xff]
    %v197 = vld [vmem:[#allocation9 + $0x68] sm:$0xff]
    %v198 = vld [vmem:[#allocation9 + $0x70] sm:$0xff]
    %v199 = vld [vmem:[#allocation9 + $0x78] sm:$0xff]
    %200 = vmatprep.subr.mxu0 0.0
    %201 = vmatpush1.msra.mxu0 %v184
    %202 = vmatprep.subr.mxu0 0.0
    %203 = vmatpush1.msra.mxu0 %v185
    %204 = vmatprep.subr.mxu0 0.0
    %205 = vmatpush1.msra.mxu0 %v186
    %206 = vmatprep.subr.mxu0 0.0
    %207 = vmatpush1.msra.mxu0 %v187
    %208 = vmatprep.subr.mxu0 0.0
    %209 = vmatpush1.msra.mxu0 %v188
    %210 = vmatprep.subr.mxu0 0.0
    %211 = vmatpush1.msra.mxu0 %v189
    %212 = vmatprep.subr.mxu0 0.0
    %213 = vmatpush1.msra.mxu0 %v190
    %214 = vmatprep.subr.mxu0 0.0
    %215 = vmatpush1.msra.mxu0 %v191
    %216 = vmatprep.subr.mxu0 0.0
    %217 = vmatpush1.msra.mxu0 %v192
    %218 = vmatprep.subr.mxu0 0.0
    %219 = vmatpush1.msra.mxu0 %v193
    %220 = vmatprep.subr.mxu0 0.0
    %221 = vmatpush1.msra.mxu0 %v194
    %222 = vmatprep.subr.mxu0 0.0
    %223 = vmatpush1.msra.mxu0 %v195
    %224 = vmatprep.subr.mxu0 0.0
    %225 = vmatpush1.msra.mxu0 %v196
    %226 = vmatprep.subr.mxu0 0.0
    %227 = vmatpush1.msra.mxu0 %v197
    %228 = vmatprep.subr.mxu0 0.0
    %229 = vmatpush1.msra.mxu0 %v198
    %230 = vmatprep.subr.mxu0 0.0
    %231 = vmatpush1.msra.mxu0 %v199
    %232 = vmatprep.subr.mxu0 0.0
    %233 = vmatpush1.msra.mxu0 0.0
    %234 = vmatprep.subr.mxu0 0.0
    %235 = vmatpush1.msra.mxu0 0.0
    %236 = vmatprep.subr.mxu0 0.0
    %237 = vmatpush1.msra.mxu0 0.0
    %238 = vmatprep.subr.mxu0 0.0
    %239 = vmatpush1.msra.mxu0 0.0
    %240 = vmatprep.subr.mxu0 0.0
    %241 = vmatpush1.msra.mxu0 0.0
    %242 = vmatprep.subr.mxu0 0.0
    %243 = vmatpush1.msra.mxu0 0.0
    %244 = vmatprep.subr.mxu0 0.0
    %245 = vmatpush1.msra.mxu0 0.0
    %246 = vmatprep.subr.mxu0 0.0
    %247 = vmatpush1.msra.mxu0 0.0
    %248 = vmatprep.subr.mxu0 0.0
    %249 = vmatpush1.msra.mxu0 0.0
    %250 = vmatprep.subr.mxu0 0.0
    %251 = vmatpush1.msra.mxu0 0.0
    %252 = vmatprep.subr.mxu0 0.0
    %253 = vmatpush1.msra.mxu0 0.0
    %254 = vmatprep.subr.mxu0 0.0
    %255 = vmatpush1.msra.mxu0 0.0
    %256 = vmatprep.subr.mxu0 0.0
    %257 = vmatpush1.msra.mxu0 0.0
    %258 = vmatprep.subr.mxu0 0.0
    %259 = vmatpush1.msra.mxu0 0.0
    %260 = vmatprep.subr.mxu0 0.0
    %261 = vmatpush1.msra.mxu0 0.0
    %262 = vmatprep.subr.mxu0 0.0
    %263 = vmatpush1.msra.mxu0 0.0
    %264 = vmatprep.mubr.f32.mxu0 0.0
    %265 = vmatmul.mubr.f32.gmra.mrb[0].mxu0 %v182
    %v266 = vpop.f32.mrb[0].mxu0
    %v267 = vadd.f32 0.0, %v266
    %v268 = vpop.f32.mrb[0].mxu0
    %269 = vdwg.mxu0
    %v270 = vadd.f32 %v183, %v267
    %271 = vst [vmem:[#allocation2] sm:$0xff] %v270
    // Predicated region
    $region46: #{tpu_custom_call.1} parent=1 // pred_check
      %p272 = pneg %p83
    $region47: #{tpu_custom_call.1} parent=1 // pred_check_branch
      %274 = sbr.rel (%p272) target = $region49
    $region48: #{tpu_custom_call.1} parent=1 // pred_region
      %v275 = vld [vmem:[#allocation2] sm:$0xff]
      %v276 = vld [vmem:[#allocation11] sm:$0x1]
      %v278 = vlaneseq
      %v279 = vshrl.u32 %v278, 7
      %v280 = vsub.s32 0, %v279
      %v281 = vrot.slane %v276, %v280
      %v283 = vadd.f32 %v275, %v281
      %284 = vst [vmem:[#allocation12] sm:$0xff] %v283
    $region49: #{tpu_custom_call.1} parent=1 // pred_fallthru
      _
    // Predicated region
    $region50: #{tpu_custom_call.1} parent=1 // pred_check
      _
    $region51: #{tpu_custom_call.1} parent=1 // pred_check_branch
      %286 = sbr.rel (0) target = $region53
    $region52: #{tpu_custom_call.1} parent=1 // pred_region
      %s288 = ssub.s32 128, 128
      %289 = vsyncadd [#allocation5], %s288
      %s291 = sshll.u32 [#allocation12], 4
      %s292 = int_to_ptr.vmem [resolvable:$true] %s291
      %294 = dma.vmem_to_hbm [thread:$0]  %s292, 128, %s5, [#allocation5]
    $region53: #{tpu_custom_call.1} parent=1 // pred_fallthru
      _
    // Predicated region
    $region54: #{tpu_custom_call.1} parent=1 // pred_check
      _
    $region55: #{tpu_custom_call.1} parent=1 // pred_check_branch
      %296 = sbr.rel (0) target = $region57
    $region56: #{tpu_custom_call.1} parent=1 // pred_region
      %297 = dma.done [#allocation5], 128
    $region57: #{tpu_custom_call.1} parent=1 // pred_fallthru
      _
    %298 = vsyncpa [#allocation4], 1
    %299 = vsyncpa [#allocation7], 1
    %300 = vsyncpa [#allocation10], 1
    %301 = vsyncpa [#allocation5], 1

</llo_original>
